<compile_context>
chip_gen: v7x
topology: tpu7x:2x2x1
jax: 0.10.0
libtpu: 0.0.40
codegen_flags: <defaults>
</compile_context>

<pallas_src>
import math

import jax
import jax.numpy as jnp
from jax.experimental import pallas as pl
from jax.experimental.pallas import tpu as pltpu


ROW_CHUNK = 128                        # rows per inner MXU step == lanes of one out row
ROW_QUANTUM = 1024                     # multi-step row tiles are multiples of this (8*128)
TILE_TARGET_BYTES = 8 * 1024 * 1024    # target bytes of one x tile (per pipeline buffer)


def scorer_kernel(x_ref, w_ref, b_ref, mask_ref, out_ref):
    # x_ref   : (TR, D)         VMEM, input dtype (f32 or bf16), streamed row tile
    # w_ref   : (1, D)          VMEM, linear weight as a lane-dense row
    # b_ref   : (1, 1)          SMEM, bias scalar (f32)
    # mask_ref: (TR//128, 128)  VMEM, caller mask dtype, lane-dense
    # out_ref : (TR//128, 128)  VMEM, f32, lane-dense
    bias = b_ref[0, 0]
    w = w_ref[...]                         # (1, D), hoisted out of the loop
    n_chunks = out_ref.shape[0]            # static

    def chunk(c, carry):
        r0 = pl.multiple_of(c * ROW_CHUNK, ROW_CHUNK)
        x_chunk = x_ref[pl.ds(r0, ROW_CHUNK), :]                     # (128, D)
        # (1, D) . (128, D)^T on the MXU -> (1, 128) f32: logits arrive
        # lane-dense and can be stored as one output row directly.
        # (MXU is idle slack in this HBM-bound kernel; on v5e-f32 a VPU
        # multiply + XLU lane-reduce would also hide, but needs a relayout.)
        logits = jax.lax.dot_general(
            w, x_chunk,
            dimension_numbers=(((1,), (1,)), ((), ())),
            preferred_element_type=jnp.float32)                      # (1, 128)
        scores = jax.nn.sigmoid(logits + bias)                       # EUP
        m = mask_ref[pl.ds(c, 1), :].astype(jnp.float32)             # (1, 128)
        out_ref[pl.ds(c, 1), :] = scores * m
        return carry

    jax.lax.fori_loop(0, n_chunks, chunk, 0, unroll=min(8, n_chunks))


def _round_up(x, m):
    return ((x + m - 1) // m) * m


def _round_down(x, m):
    return (x // m) * m


def _vmem_capacity_bytes():
    try:
        cap = getattr(pltpu.get_tpu_info(), "vmem_capacity_bytes", None)
        if cap:
            return int(cap)
    except Exception:
        pass
    return 64 * 1024 * 1024  # conservative default (v7x per-TC VMEM)


def _pick_row_tile(rows_padded, row_bytes):
    """Row tile: ~TILE_TARGET_BYTES per buffer, multiple of ROW_QUANTUM when the
    grid has multiple steps (keeps lane-dense mask/out blocks (8,128)-aligned),
    and >= 4 grid steps when there is enough work (v7x megacore)."""
    if rows_padded <= ROW_QUANTUM:
        return rows_padded                       # single step; block == full arrays
    byte_tr = max(ROW_QUANTUM,
                  _round_down(TILE_TARGET_BYTES // row_bytes, ROW_QUANTUM))
    tr = min(byte_tr, _round_down(rows_padded, ROW_QUANTUM))
    if rows_padded >= 4 * ROW_QUANTUM:
        tr = min(tr, _round_down(rows_padded // 4, ROW_QUANTUM))
    return max(tr, ROW_QUANTUM)


def linear_scorer(sent_vectors, weight, bias, mask_cls):
    """Pallas port of LinearScorer.forward.

    sent_vectors: (B, S, D) float32 or bfloat16
    weight      : (1, D)    torch nn.Linear(d_model, 1).weight layout
    bias        : scalar-like (e.g. (1, 1))
    mask_cls    : (B, S)    any dtype (kernel applies mask_cls.float())
    returns     : (B, S)    float32 sentence scores
    """
    B, S, D = sent_vectors.shape
    R = B * S
    x = sent_vectors.reshape(R, D)               # fuse batch+seq -> one row axis

    itemsize = jnp.dtype(x.dtype).itemsize
    row_bytes = D * itemsize
    rows_padded = _round_up(R, ROW_CHUNK)        # lane-dense mask/out row count
    tr = _pick_row_tile(rows_padded, row_bytes)
    grid = (pl.cdiv(rows_padded, tr),)

    # Lane-dense mask in its ORIGINAL dtype; only the <128-element tail is
    # padded -- the (R, D) activations are never copied.
    mask_flat = mask_cls.reshape(R)
    if rows_padded != R:
        mask_flat = jnp.pad(mask_flat, (0, rows_padded - R))
    mask2d = mask_flat.reshape(rows_padded // ROW_CHUNK, ROW_CHUNK)

    # Lane-dense weight row; cast to the activation dtype so MXU operands match
    # (tiny perturbation vs f32 weights when activations are bf16).
    w_row = jnp.asarray(weight).reshape(1, D).astype(x.dtype)
    b = jnp.asarray(bias, dtype=jnp.float32).reshape(1, 1)

    # VMEM budget: two double-buffered x tiles dominate (mask/out/weight are
    # tiny once lane-dense). Cap at ~3/4 of physical VMEM: raises the scoped
    # default for big d_model on v5e/v6e, stays inside v7x's 64 MiB.
    # (d_model so large that two 1024-row tiles exceed v7x VMEM would need an
    # extra d_model-split grid axis; out of scope here.)
    tile_bytes = tr * row_bytes
    vmem_limit = max(32 * 1024 * 1024, int(2.5 * tile_bytes))
    vmem_limit = min(vmem_limit, (_vmem_capacity_bytes() * 3) // 4)

    out = pl.pallas_call(
        scorer_kernel,
        out_shape=jax.ShapeDtypeStruct((rows_padded // ROW_CHUNK, ROW_CHUNK),
                                       jnp.float32),
        grid=grid,
        in_specs=[
            pl.BlockSpec((tr, D), lambda r: (r, 0)),                       # x rows
            pl.BlockSpec((1, D), lambda r: (0, 0)),                        # weight row
            pl.BlockSpec(memory_space=pltpu.MemorySpace.SMEM),             # bias
            pl.BlockSpec((tr // ROW_CHUNK, ROW_CHUNK), lambda r: (r, 0)),  # mask
        ],
        out_specs=pl.BlockSpec((tr // ROW_CHUNK, ROW_CHUNK), lambda r: (r, 0)),
        compiler_params=pltpu.CompilerParams(
            dimension_semantics=("parallel",),
            vmem_limit_bytes=vmem_limit,
        ),
        cost_estimate=pl.CostEstimate(
            flops=2 * R * D,
            transcendentals=R,
            bytes_accessed=R * D * itemsize
            + R * jnp.dtype(mask_cls.dtype).itemsize
            + rows_padded * 4
            + D * itemsize,
        ),
    )(x, w_row, b, mask2d)

    return out.reshape(-1)[:R].reshape(B, S)


if __name__ == "__main__":
    B, S, D = 2, 8, 128  # batch, sentences per doc, d_model

    key = jax.random.PRNGKey(0)
    k_x, k_m, k_w, k_b = jax.random.split(key, 4)

    # Deterministic inputs (kernel also accepts bf16 sent_vectors unchanged).
    sent_vectors = jax.random.normal(k_x, (B, S, D), dtype=jnp.float32)
    mask_cls = (jax.random.uniform(k_m, (B, S)) > 0.3).astype(jnp.float32)

    # nn.Linear(d_model, 1) default init: U(-1/sqrt(d_model), 1/sqrt(d_model)).
    bound = 1.0 / math.sqrt(D)
    weight = jax.random.uniform(k_w, (1, D), minval=-bound, maxval=bound,
                                dtype=jnp.float32)
    bias = jax.random.uniform(k_b, (1, 1), minval=-bound, maxval=bound,
                              dtype=jnp.float32)

    out = jax.block_until_ready(linear_scorer(sent_vectors, weight, bias, mask_cls))

    # Pure-JAX reference check.
    ref = jax.nn.sigmoid(
        jnp.einsum("bsd,od->bso", sent_vectors, weight) + bias[0, 0]
    )[..., 0] * mask_cls
    assert out.shape == (B, S)
    assert jnp.allclose(out, ref, atol=5e-3, rtol=5e-3), "mismatch vs reference"
    # Masked positions must be exactly zero.
    assert bool(jnp.all(jnp.where(mask_cls == 0.0, out == 0.0, True)))

    print("KERNEL_OK")
</pallas_src>

<mosaic_0001>
module attributes {stable_mosaic.version = 11 : i64} {
  func.func @scorer_kernel(%arg0: i32, %arg1: memref<128x128xf32, #tpu.memory_space<vmem>>, %arg2: memref<1x128xf32, #tpu.memory_space<vmem>>, %arg3: memref<1x1xf32, #tpu.memory_space<smem>>, %arg4: memref<1x128xf32, #tpu.memory_space<vmem>>, %arg5: memref<1x128xf32, #tpu.memory_space<vmem>>) attributes {dimension_semantics = [#tpu.dimension_semantics<parallel>], iteration_bounds = array<i64: 1>, scalar_prefetch = 0 : i64, scratch_operands = 0 : i64, tpu.core_type = #tpu.core_type<tc>, window_params = [{transform_indices = @transform_0, window_bounds = array<i64: 128, 128>}, {pipeline_mode = #tpu.pipeline_mode<synchronous>, transform_indices = @transform_1, window_bounds = array<i64: 1, 128>}, {transform_indices = @transform_2, window_bounds = array<i64: 1, 1>}, {transform_indices = @transform_3, window_bounds = array<i64: 1, 128>}, {transform_indices = @transform_4, window_bounds = array<i64: 1, 128>}]} {
    %c0 = arith.constant 0 : index
    %c0_0 = arith.constant 0 : index
    %0 = memref.load %arg3[%c0, %c0_0] : memref<1x1xf32, #tpu.memory_space<smem>>
    %c0_1 = arith.constant 0 : index
    %c0_2 = arith.constant 0 : index
    %1 = vector.load %arg2[%c0_1, %c0_2] : memref<1x128xf32, #tpu.memory_space<vmem>>, vector<1x128xf32>
    %c0_i32 = arith.constant 0 : i32
    %c128_i32 = arith.constant 128 : i32
    %2 = arith.muli %c0_i32, %c128_i32 : i32
    %3 = tpu.assume_multiple %2, 128 : i32
    %4 = arith.index_cast %3 : i32 to index
    %c0_3 = arith.constant 0 : index
    %5 = vector.load %arg1[%4, %c0_3] : memref<128x128xf32, #tpu.memory_space<vmem>>, vector<128x128xf32>
    %cst = arith.constant dense<0.000000e+00> : vector<1x128xf32>
    %6 = tpu.matmul %1, %5, %cst {dimension_numbers = #tpu.dot_dimension_numbers<[1], [1], [0], [0], [0, 0, 1, 0], [], []>} : vector<1x128xf32>, vector<128x128xf32>, vector<1x128xf32> -> vector<1x128xf32>
    %7 = vector.broadcast %0 : f32 to vector<1x128xf32>
    %8 = arith.addf %6, %7 : vector<1x128xf32>
    %9 = arith.negf %8 : vector<1x128xf32>
    %10 = math.exp %9 : vector<1x128xf32>
    %cst_4 = arith.constant 1.000000e+00 : f32
    %11 = vector.broadcast %cst_4 : f32 to vector<1x128xf32>
    %12 = arith.addf %11, %10 : vector<1x128xf32>
    %13 = arith.divf %11, %12 : vector<1x128xf32>
    %14 = arith.index_cast %c0_i32 : i32 to index
    %c0_5 = arith.constant 0 : index
    %15 = vector.load %arg4[%14, %c0_5] : memref<1x128xf32, #tpu.memory_space<vmem>>, vector<1x128xf32>
    %16 = arith.mulf %13, %15 : vector<1x128xf32>
    %17 = arith.index_cast %c0_i32 : i32 to index
    %c0_6 = arith.constant 0 : index
    %18 = vector.load %arg5[%17, %c0_6] : memref<1x128xf32, #tpu.memory_space<vmem>>, vector<1x128xf32>
    tpu.vector_store %arg5[%17, %c0_6], %16 {strides = array<i32>} : memref<1x128xf32, #tpu.memory_space<vmem>>, vector<1x128xf32>,
    %c1_i32 = arith.constant 1 : i32
    return
  }
  func.func @transform_0(%arg0: i32) -> (i32, i32) {
    %c0_i32 = arith.constant 0 : i32
    %c0_i32_0 = arith.constant 0 : i32
    return %arg0, %c0_i32 : i32, i32
  }
  func.func @transform_1(%arg0: i32) -> (i32, i32) {
    %c0_i32 = arith.constant 0 : i32
    %c0_i32_0 = arith.constant 0 : i32
    %c0_i32_1 = arith.constant 0 : i32
    return %c0_i32, %c0_i32_0 : i32, i32
  }
  func.func @transform_2(%arg0: i32) -> (i32, i32) {
    %c0_i32 = arith.constant 0 : i32
    %c0_i32_0 = arith.constant 0 : i32
    %c0_i32_1 = arith.constant 0 : i32
    return %c0_i32, %c0_i32_0 : i32, i32
  }
  func.func @transform_3(%arg0: i32) -> (i32, i32) {
    %c0_i32 = arith.constant 0 : i32
    %c0_i32_0 = arith.constant 0 : i32
    return %arg0, %c0_i32 : i32, i32
  }
  func.func @transform_4(%arg0: i32) -> (i32, i32) {
    %c0_i32 = arith.constant 0 : i32
    %c0_i32_0 = arith.constant 0 : i32
    return %arg0, %c0_i32 : i32, i32
  }
}

</mosaic_0001>

<llo_original>
// kernel: tpu_custom_call.1
$region0: #{tpu_custom_call.1}
  #allocation0 [shape = 'u32[]', space=smem, size = 0x4, offset = 0x4, fixed_abs, tag = 'smem constant byte address 0x4 - core index']
  #allocation1 [shape = 'u32[144,128]{1,0:T(1,128)}', space=vmem, size = 0x12000, scoped, tag = 'internal scratch']
  #allocation2 [shape = 'f32[1,1]{1,0:T(1,128)S(6)}', space=smem, size = 0x200, scoped, tag = 'scoped memory for tpu_custom_call.1']
  %s0 = inlined_call_operand.hbm [shape: f32[16,128], index: 0, kind: input, shape index: {}]
  %s1 = inlined_call_operand.vmem [shape: f32[1,128], index: 1, kind: input, shape index: {}]
  %s2 = inlined_call_operand.<no memory space> [shape: f32[1,1], index: 2, kind: input, shape index: {}]
  %s3 = inlined_call_operand.vmem [shape: f32[1,128], index: 3, kind: input, shape index: {}]
  %s4 = inlined_call_operand.hbm [shape: f32[1,128], index: 4, kind: output, shape index: {}]
  %s5 = sld [smem:[#allocation0]]
  $region30: #{tpu_custom_call.1} parent=0
    _
  %s7 = ssub.s32 1, %s5
  %s8 = scalar_select 0, %s7, %s5
  %9 = sst [smem:[#allocation2]] %s2
  $region1: #{tpu_custom_call.1} parent=0
    #allocation3 [shape = 'u8[65536]{0}', space=vmem, size = 0x10000, scoped, tag = 'input window, operand 0, single buffered']
    #allocation4 [shape = 's32[1]{0}', space=sflag, size = 0x4, scoped, tag = 'scoped memory for tpu_custom_call.1']
    #allocation5 [shape = 's32[1]{0}', space=sflag, size = 0x4, scoped, tag = 'scoped memory for tpu_custom_call.1']
    #allocation6 [shape = 'u8[512]{0}', space=vmem, size = 0x400, scoped, tag = 'output window, operand 0, single buffered']
    %10 = vsyncpa [#allocation4], 0
    %11 = vsyncpa [#allocation5], 0
    // Predicated region
    $region2: #{tpu_custom_call.1} parent=1 // pred_check
      _
    $region3: #{tpu_custom_call.1} parent=1 // pred_check_branch
      %13 = sbr.rel (0) target = $region5
    $region4: #{tpu_custom_call.1} parent=1 // pred_region
      %s15 = ssub.s32 2048, 256
      %16 = vsyncadd [#allocation4], %s15
      %s17 = sshll.u32 [#allocation3], 4
      %s18 = int_to_ptr.vmem [resolvable:$true] %s17
      %23 = dma.hbm_to_vmem [thread:$0]  %s0, 256, %s18, [#allocation4], 128, 128, 8
    $region5: #{tpu_custom_call.1} parent=1 // pred_fallthru
      _
    // Predicated region
    $region6: #{tpu_custom_call.1} parent=1 // pred_check
      _
    $region7: #{tpu_custom_call.1} parent=1 // pred_check_branch
      %25 = sbr.rel (0) target = $region9
    $region8: #{tpu_custom_call.1} parent=1 // pred_region
      _
    $region9: #{tpu_custom_call.1} parent=1 // pred_fallthru
      _
    // Predicated region
    $region10: #{tpu_custom_call.1} parent=1 // pred_check
      _
    $region11: #{tpu_custom_call.1} parent=1 // pred_check_branch
      %27 = sbr.rel (0) target = $region13
    $region12: #{tpu_custom_call.1} parent=1 // pred_region
      _
    $region13: #{tpu_custom_call.1} parent=1 // pred_fallthru
      _
    // Predicated region
    $region14: #{tpu_custom_call.1} parent=1 // pred_check
      _
    $region15: #{tpu_custom_call.1} parent=1 // pred_check_branch
      %29 = sbr.rel (0) target = $region17
    $region16: #{tpu_custom_call.1} parent=1 // pred_region
      _
    $region17: #{tpu_custom_call.1} parent=1 // pred_fallthru
      _
    // Predicated region
    $region18: #{tpu_custom_call.1} parent=1 // pred_check
      _
    $region19: #{tpu_custom_call.1} parent=1 // pred_check_branch
      %31 = sbr.rel (0) target = $region21
    $region20: #{tpu_custom_call.1} parent=1 // pred_region
      %32 = dma.done [#allocation4], 2048
    $region21: #{tpu_custom_call.1} parent=1 // pred_fallthru
      _
    %s33 = sld [smem:[#allocation2]]
    %v34 = vld [vmem:[%s1] sm:$0x1]
    %v35 = vld [vmem:[#allocation3] sm:$0xff]
    %v36 = vld [vmem:[#allocation3 + $0x8] sm:$0xff]
    %v37 = vld [vmem:[#allocation3 + $0x10] sm:$0xff]
    %v38 = vld [vmem:[#allocation3 + $0x18] sm:$0xff]
    %v39 = vld [vmem:[#allocation3 + $0x20] sm:$0xff]
    %v40 = vld [vmem:[#allocation3 + $0x28] sm:$0xff]
    %v41 = vld [vmem:[#allocation3 + $0x30] sm:$0xff]
    %v42 = vld [vmem:[#allocation3 + $0x38] sm:$0xff]
    %v43 = vld [vmem:[#allocation3 + $0x40] sm:$0xff]
    %v44 = vld [vmem:[#allocation3 + $0x48] sm:$0xff]
    %v45 = vld [vmem:[#allocation3 + $0x50] sm:$0xff]
    %v46 = vld [vmem:[#allocation3 + $0x58] sm:$0xff]
    %v47 = vld [vmem:[#allocation3 + $0x60] sm:$0xff]
    %v48 = vld [vmem:[#allocation3 + $0x68] sm:$0xff]
    %v49 = vld [vmem:[#allocation3 + $0x70] sm:$0xff]
    %v50 = vld [vmem:[#allocation3 + $0x78] sm:$0xff]
    %v51 = vstv %s33
    %52 = vmatprep.subr.mxu0 0.0
    %53 = vmatpush1.xpose.msra.mxu0 %v35
    %54 = vmatprep.subr.mxu0 0.0
    %55 = vmatpush1.xpose.msra.mxu0 %v36
    %56 = vmatprep.subr.mxu0 0.0
    %57 = vmatpush1.xpose.msra.mxu0 %v37
    %58 = vmatprep.subr.mxu0 0.0
    %59 = vmatpush1.xpose.msra.mxu0 %v38
    %60 = vmatprep.subr.mxu0 0.0
    %61 = vmatpush1.xpose.msra.mxu0 %v39
    %62 = vmatprep.subr.mxu0 0.0
    %63 = vmatpush1.xpose.msra.mxu0 %v40
    %64 = vmatprep.subr.mxu0 0.0
    %65 = vmatpush1.xpose.msra.mxu0 %v41
    %66 = vmatprep.subr.mxu0 0.0
    %67 = vmatpush1.xpose.msra.mxu0 %v42
    %68 = vmatprep.subr.mxu0 0.0
    %69 = vmatpush1.xpose.msra.mxu0 %v43
    %70 = vmatprep.subr.mxu0 0.0
    %71 = vmatpush1.xpose.msra.mxu0 %v44
    %72 = vmatprep.subr.mxu0 0.0
    %73 = vmatpush1.xpose.msra.mxu0 %v45
    %74 = vmatprep.subr.mxu0 0.0
    %75 = vmatpush1.xpose.msra.mxu0 %v46
    %76 = vmatprep.subr.mxu0 0.0
    %77 = vmatpush1.xpose.msra.mxu0 %v47
    %78 = vmatprep.subr.mxu0 0.0
    %79 = vmatpush1.xpose.msra.mxu0 %v48
    %80 = vmatprep.subr.mxu0 0.0
    %81 = vmatpush1.xpose.msra.mxu0 %v49
    %82 = vmatprep.subr.mxu0 0.0
    %83 = vmatpush1.xpose.msra.mxu0 %v50
    %84 = vmatprep.subr.mxu0 0.0
    %85 = vmatpush1.xpose.msra.mxu0 0.0
    %86 = vmatprep.subr.mxu0 0.0
    %87 = vmatpush1.xpose.msra.mxu0 0.0
    %88 = vmatprep.subr.mxu0 0.0
    %89 = vmatpush1.xpose.msra.mxu0 0.0
    %90 = vmatprep.subr.mxu0 0.0
    %91 = vmatpush1.xpose.msra.mxu0 0.0
    %92 = vmatprep.subr.mxu0 0.0
    %93 = vmatpush1.xpose.msra.mxu0 0.0
    %94 = vmatprep.subr.mxu0 0.0
    %95 = vmatpush1.xpose.msra.mxu0 0.0
    %96 = vmatprep.subr.mxu0 0.0
    %97 = vmatpush1.xpose.msra.mxu0 0.0
    %98 = vmatprep.subr.mxu0 0.0
    %99 = vmatpush1.xpose.msra.mxu0 0.0
    %100 = vmatprep.subr.mxu0 0.0
    %101 = vmatpush1.xpose.msra.mxu0 0.0
    %102 = vmatprep.subr.mxu0 0.0
    %103 = vmatpush1.xpose.msra.mxu0 0.0
    %104 = vmatprep.subr.mxu0 0.0
    %105 = vmatpush1.xpose.msra.mxu0 0.0
    %106 = vmatprep.subr.mxu0 0.0
    %107 = vmatpush1.xpose.msra.mxu0 0.0
    %108 = vmatprep.subr.mxu0 0.0
    %109 = vmatpush1.xpose.msra.mxu0 0.0
    %110 = vmatprep.subr.mxu0 0.0
    %111 = vmatpush1.xpose.msra.mxu0 0.0
    %112 = vmatprep.subr.mxu0 0.0
    %113 = vmatpush1.xpose.msra.mxu0 0.0
    %114 = vmatprep.subr.mxu0 0.0
    %115 = vmatpush1.xpose.msra.mxu0 0.0
    %116 = vmatprep.mubr.f32.mxu0 0.0
    %117 = vmatmul.mubr.f32.gmra.mrb[0].mxu0 %v34
    %v118 = vpop.f32.mrb[0].mxu0
    %v119 = vadd.f32 %v51, %v118
    %v120 = vpop.f32.mrb[0].mxu0
    %121 = vdwg.mxu0
    %v122 = vxor.u32 %v119, 2147483648
    %v123 = vmul.f32 %v122, 1.442695
    %v124 = vpow.pop %v123
    %v125 = vadd.f32 %v124, 1.0
    %v126 = vrcp.pop %v125
    %v127 = vmul.f32 1.0, %v126
    %v128 = vld [vmem:[%s3] sm:$0x1]
    %v129 = vmul.f32 %v127, %v128
    %130 = vst [vmem:[#allocation6] sm:$0x1] %v129
    // Predicated region
    $region22: #{tpu_custom_call.1} parent=1 // pred_check
      _
    $region23: #{tpu_custom_call.1} parent=1 // pred_check_branch
      %132 = sbr.rel (0) target = $region25
    $region24: #{tpu_custom_call.1} parent=1 // pred_region
      %s134 = ssub.s32 16, 16
      %135 = vsyncadd [#allocation5], %s134
      %s137 = sshll.u32 [#allocation6], 4
      %s138 = int_to_ptr.vmem [resolvable:$true] %s137
      %140 = dma.vmem_to_hbm [thread:$0]  %s138, 16, %s4, [#allocation5]
    $region25: #{tpu_custom_call.1} parent=1 // pred_fallthru
      _
    // Predicated region
    $region26: #{tpu_custom_call.1} parent=1 // pred_check
      _
    $region27: #{tpu_custom_call.1} parent=1 // pred_check_branch
      %142 = sbr.rel (0) target = $region29
    $region28: #{tpu_custom_call.1} parent=1 // pred_region
      %143 = dma.done [#allocation5], 16
    $region29: #{tpu_custom_call.1} parent=1 // pred_fallthru
      _
    %144 = vsyncpa [#allocation4], 1
    %145 = vsyncpa [#allocation5], 1

</llo_original>
